<compile_context>
chip_gen: v6e
topology: v6e:2x2x1
jax: 0.10.0
libtpu: 0.0.40
codegen_flags: <defaults>
</compile_context>

<pallas_src>
import jax
import jax.numpy as jnp
from jax import lax
from jax.experimental import pallas as pl
from jax.experimental.pallas import tpu as pltpu


def _attn_mask_kernel(seq_ref, q_ref, k_ref, o_ref):
    """One (head, q-tile, k-tile) grid step.

    seq_ref: (tq, tk) int32   slab of item_seq at this tile's origin
    q_ref:   (tq, D)  float   this head's query rows for the q-tile
    k_ref:   (D, tk)  float   this head's key cols for the k-tile
    o_ref:   (tq, tk) float32 output tile
    """
    tq, tk = o_ref.shape

    # Rebuild tril(item_seq < 100) for this tile only, offset by tile origin.
    row0 = pl.program_id(1) * tq
    col0 = pl.program_id(2) * tk
    rows = lax.broadcasted_iota(jnp.int32, (tq, tk), 0) + row0
    cols = lax.broadcasted_iota(jnp.int32, (tq, tk), 1) + col0
    tril = jnp.logical_and(seq_ref[...] < 100, cols <= rows).astype(jnp.float32)

    scores = jnp.dot(q_ref[...], k_ref[...],
                     preferred_element_type=jnp.float32)

    # Single fused store per tile.
    o_ref[...] = scores + tril


def _pick_tile(dim, pref):
    """Full extent for small / non-divisible dims, else an MXU/lane friendly tile."""
    return dim if (dim <= pref or dim % pref != 0) else pref


def my_model_forward(item_seq, query_layer, key_layer, compute_dtype=None):
    """item_seq: (S, S) int; query_layer: (1, H, Q, D); key_layer: (1, H, D, K).

    compute_dtype: optionally cast q/k (e.g. jnp.bfloat16 on v6e/v7x for MXU
    peak); accumulation stays f32. Default None keeps the input precision so
    the f32 reference check passes at tight tolerance.
    """
    q = query_layer[0]          # (H, Q, D)
    k = key_layer[0]            # (H, D, K)
    H, Q, D = q.shape
    K = k.shape[-1]
    # The broadcast add requires the mask slab to line up with (Q, K).
    assert item_seq.shape == (Q, K), "tril mask must match (Q, K) of the scores"

    if compute_dtype is not None:
        q = q.astype(compute_dtype)
        k = k.astype(compute_dtype)

    tq = _pick_tile(Q, 256)     # q rows per MXU issue
    tk = _pick_tile(K, 512)     # lane-dense output columns when K is large
    grid = (H, Q // tq, K // tk)

    flops = 2 * H * Q * K * D
    bytes_accessed = (item_seq.size * 4
                      + q.size * q.dtype.itemsize
                      + k.size * k.dtype.itemsize
                      + H * Q * K * 4)

    out = pl.pallas_call(
        _attn_mask_kernel,
        out_shape=jax.ShapeDtypeStruct((H, Q, K), jnp.float32),
        grid=grid,
        in_specs=[
            # (tq, tk) slab of item_seq for this (q-tile, k-tile)
            pl.BlockSpec((tq, tk), lambda h, qi, ki: (qi, ki)),
            # head h squeezed out; (tq, D) query tile
            pl.BlockSpec((None, tq, D), lambda h, qi, ki: (h, qi, 0)),
            # head h squeezed out; (D, tk) key tile
            pl.BlockSpec((None, D, tk), lambda h, qi, ki: (h, 0, ki)),
        ],
        out_specs=pl.BlockSpec((None, tq, tk), lambda h, qi, ki: (h, qi, ki)),
        compiler_params=pltpu.CompilerParams(
            dimension_semantics=("parallel", "parallel", "parallel"),
            vmem_limit_bytes=64 * 1024 * 1024,
        ),
        cost_estimate=pl.CostEstimate(
            flops=flops, transcendentals=0, bytes_accessed=bytes_accessed),
    )(item_seq.astype(jnp.int32), q, k)

    return out[None]  # (1, H, Q, K)


if __name__ == "__main__":
    key = jax.random.PRNGKey(0)
    k_seq, k_q, k_k = jax.random.split(key, 3)

    # item_seq must broadcast (via its trailing 2 dims) against (1, 2, 2, 2):
    # (S, S) = (2, 2) integer sequence with values straddling 100.
    item_seq = jax.random.randint(k_seq, (2, 2), 0, 200, dtype=jnp.int32)

    # Deterministic stand-ins for torch.rand((1,2,2,32)) / torch.rand((1,2,32,2)).
    query_layer = jax.random.uniform(k_q, (1, 2, 2, 32), dtype=jnp.float32)
    key_layer = jax.random.uniform(k_k, (1, 2, 32, 2), dtype=jnp.float32)

    out = my_model_forward(item_seq, query_layer, key_layer)
    out = jax.block_until_ready(out)

    # Pure-JAX reference check.
    mask = (item_seq < 100)
    tril = jnp.tril(mask).astype(jnp.float32)
    ref = jnp.einsum("bhqd,bhdk->bhqk", query_layer, key_layer) + tril
    assert out.shape == (1, 2, 2, 2)
    assert jnp.allclose(out, ref, atol=1e-5), "mismatch vs reference"

    print("KERNEL_OK")
</pallas_src>

<mosaic_0001>
module attributes {stable_mosaic.version = 11 : i64} {
  func.func @_attn_mask_kernel(%arg0: i32, %arg1: i32, %arg2: i32, %arg3: memref<2x2xi32, #tpu.memory_space<vmem>>, %arg4: memref<1x2x32xf32, #tpu.memory_space<vmem>>, %arg5: memref<1x32x2xf32, #tpu.memory_space<vmem>>, %arg6: memref<1x2x2xf32, #tpu.memory_space<vmem>>) attributes {dimension_semantics = [#tpu.dimension_semantics<parallel>, #tpu.dimension_semantics<parallel>, #tpu.dimension_semantics<parallel>], iteration_bounds = array<i64: 2, 1, 1>, scalar_prefetch = 0 : i64, scratch_operands = 0 : i64, tpu.core_type = #tpu.core_type<tc>, window_params = [{transform_indices = @transform_0, window_bounds = array<i64: 2, 2>}, {transform_indices = @transform_1, window_bounds = array<i64: 1, 2, 32>}, {transform_indices = @transform_2, window_bounds = array<i64: 1, 32, 2>}, {transform_indices = @transform_3, window_bounds = array<i64: 1, 2, 2>}]} {
    %c2_i32 = arith.constant 2 : i32
    %0 = arith.muli %arg1, %c2_i32 : i32
    %c2_i32_0 = arith.constant 2 : i32
    %1 = arith.muli %arg2, %c2_i32_0 : i32
    %2 = tpu.iota {dimensions = array<i32: 0>} : vector<2x2xi32>
    %3 = vector.broadcast %0 : i32 to vector<2x2xi32>
    %4 = arith.addi %2, %3 : vector<2x2xi32>
    %5 = tpu.iota {dimensions = array<i32: 1>} : vector<2x2xi32>
    %6 = vector.broadcast %1 : i32 to vector<2x2xi32>
    %7 = arith.addi %5, %6 : vector<2x2xi32>
    %c0 = arith.constant 0 : index
    %c0_1 = arith.constant 0 : index
    %8 = vector.load %arg3[%c0, %c0_1] : memref<2x2xi32, #tpu.memory_space<vmem>>, vector<2x2xi32>
    %c100_i32 = arith.constant 100 : i32
    %9 = vector.broadcast %c100_i32 : i32 to vector<2x2xi32>
    %10 = arith.cmpi slt, %8, %9 : vector<2x2xi32>
    %11 = arith.cmpi sle, %7, %4 : vector<2x2xi32>
    %12 = arith.andi %10, %11 : vector<2x2xi1>
    %13 = arith.extui %12 : vector<2x2xi1> to vector<2x2xi32>
    %14 = arith.sitofp %13 : vector<2x2xi32> to vector<2x2xf32>
    %c0_2 = arith.constant 0 : index
    %c0_3 = arith.constant 0 : index
    %c0_4 = arith.constant 0 : index
    %15 = vector.load %arg4[%c0_2, %c0_3, %c0_4] : memref<1x2x32xf32, #tpu.memory_space<vmem>>, vector<1x2x32xf32>
    %16 = vector.shape_cast %15 : vector<1x2x32xf32> to vector<2x32xf32>
    %c0_5 = arith.constant 0 : index
    %c0_6 = arith.constant 0 : index
    %c0_7 = arith.constant 0 : index
    %17 = vector.load %arg5[%c0_5, %c0_6, %c0_7] : memref<1x32x2xf32, #tpu.memory_space<vmem>>, vector<1x32x2xf32>
    %18 = vector.shape_cast %17 : vector<1x32x2xf32> to vector<32x2xf32>
    %cst = arith.constant dense<0.000000e+00> : vector<2x2xf32>
    %19 = tpu.matmul %16, %18, %cst {dimension_numbers = #tpu.dot_dimension_numbers<[1], [0], [0], [1], [0, 0, 1, 1], [], []>} : vector<2x32xf32>, vector<32x2xf32>, vector<2x2xf32> -> vector<2x2xf32>
    %20 = arith.addf %19, %14 : vector<2x2xf32>
    %c0_8 = arith.constant 0 : index
    %c0_9 = arith.constant 0 : index
    %c0_10 = arith.constant 0 : index
    %21 = vector.load %arg6[%c0_8, %c0_9, %c0_10] : memref<1x2x2xf32, #tpu.memory_space<vmem>>, vector<1x2x2xf32>
    %22 = vector.shape_cast %21 : vector<1x2x2xf32> to vector<2x2xf32>
    %23 = vector.shape_cast %20 : vector<2x2xf32> to vector<1x2x2xf32>
    tpu.vector_store %arg6[%c0_8, %c0_9, %c0_10], %23 {strides = array<i32>} : memref<1x2x2xf32, #tpu.memory_space<vmem>>, vector<1x2x2xf32>,
    return
  }
  func.func @transform_0(%arg0: i32, %arg1: i32, %arg2: i32) -> (i32, i32) {
    %c0_i32 = arith.constant 0 : i32
    return %arg1, %arg2 : i32, i32
  }
  func.func @transform_1(%arg0: i32, %arg1: i32, %arg2: i32) -> (i32, i32, i32) {
    %c0_i32 = arith.constant 0 : i32
    %c0_i32_0 = arith.constant 0 : i32
    return %arg0, %arg1, %c0_i32 : i32, i32, i32
  }
  func.func @transform_2(%arg0: i32, %arg1: i32, %arg2: i32) -> (i32, i32, i32) {
    %c0_i32 = arith.constant 0 : i32
    %c0_i32_0 = arith.constant 0 : i32
    return %arg0, %c0_i32, %arg2 : i32, i32, i32
  }
  func.func @transform_3(%arg0: i32, %arg1: i32, %arg2: i32) -> (i32, i32, i32) {
    %c0_i32 = arith.constant 0 : i32
    return %arg0, %arg1, %arg2 : i32, i32, i32
  }
}

</mosaic_0001>

<llo_original>
// kernel: tpu_custom_call.1
$region0: #{tpu_custom_call.1}
  #allocation0 [shape = 'u32[]', space=smem, size = 0x4, offset = 0x4, fixed_abs, tag = 'smem constant byte address 0x4 - core index']
  #allocation1 [shape = 'u32[144,128]{1,0:T(1,128)}', space=vmem, size = 0x12000, scoped, tag = 'internal scratch']
  %s0 = inlined_call_operand.vmem [shape: s32[2,2], index: 0, kind: input, shape index: {}]
  %s1 = inlined_call_operand.vmem [shape: f32[2,2,32], index: 1, kind: input, shape index: {}]
  %s2 = inlined_call_operand.vmem [shape: f32[2,32,2], index: 2, kind: input, shape index: {}]
  %s3 = inlined_call_operand.hbm [shape: f32[2,2,2], index: 3, kind: output, shape index: {}]
  %s4 = sld [smem:[#allocation0]]
  $region45: #{tpu_custom_call.1} parent=0
    _
  %s6 = ssub.s32 1, %s4
  %s7 = scalar_select 0, %s6, %s4
  $region1: #{tpu_custom_call.1} parent=0
    #allocation2 [shape = 'u8[2048]{0}', space=vmem, size = 0x800, scoped, tag = 'output window, operand 0']
    #allocation3 [shape = 's32[2]{0}', space=sflag, size = 0x8, scoped, tag = 'scoped memory for tpu_custom_call.1']
    %8 = vsyncpa [#allocation3], 0
    %s9 = scalar_lea.sflag [#allocation3], 1
    %10 = vsyncpa %s9, 0
    loop: start=0, step=1, limit=4
    $region2: #{tpu_custom_call.1} parent=1 // loop_pre_header
      _
    $region3: #{tpu_custom_call.1} parent=1 // loop_header
      %s12 = sphi 0, %s16
      %p13 = scmp.ge.s32.totalorder %s12, 4
      %s19 = sphi 0, %s38
      %s20 = sphi 0, %s34
      %s21 = sphi 0, %s30
      %s22 = sphi 0, %s19
      %s23 = sphi 0, %s20
      %s24 = sphi 0, %s21
      %s25 = sphi 0, %s22
      %s26 = sphi 0, %s23
      %s27 = sphi 0, %s24
      %s43 = sphi 0, %s45
      %s46 = sphi 0, %s43
      %s47 = sphi 0, %s46
      %s63 = sphi 0, %s47
      %s71 = sphi 0, %s73
      %s74 = sphi 0, %s71
      %s75 = sphi 0, %s74
      %s91 = sphi 0, %s75
      %s99 = sphi 0, %s101
      %s102 = sphi 0, %s99
      %s103 = sphi 0, %s102
      %s119 = sphi 0, %s103
      %s129 = sphi 0, %s131
      %s132 = sphi 0, %s129
      %s133 = sphi 0, %s132
      %s149 = sphi 0, %s133
    $region4: #{tpu_custom_call.1} parent=1 // loop_header_branch
      %15 = sbr.rel (%p13) target = $region8
    $region5: #{tpu_custom_call.1} parent=1 // loop_body
      %s17 = ssub.s32 %s12, 1
      %s18 = ssub.s32 %s12, 2
      %s28 = sadd.s32 1, %s21
      %p29 = scmp.ge.s32.totalorder %s28, 1
      %s30 = scalar_select %p29, 0, %s28
      %s31 = sadd.s32 1, %s20
      %s32 = scalar_select %p29, %s31, %s20
      %p33 = scmp.ge.s32.totalorder %s32, 1
      %s34 = scalar_select %p33, 0, %s32
      %s35 = sadd.s32 1, %s19
      %s36 = scalar_select %p33, %s35, %s19
      %p37 = scmp.ge.s32.totalorder %s36, 2
      %s38 = scalar_select %p37, 0, %s36
      %s39 = ssub.s32 %s20, %s34
      %s40 = ssub.s32 %s21, %s30
      %s41 = sor.u32 %s39, %s40
      %p42 = scmp.eq.s32.totalorder %s41, 0
      %s44 = sadd.s32 %s43, 1
      %s45 = scalar_select %p42, %s43, %s44
      %p48 = pneg %p42
      %p49 = scmp.eq.s32.totalorder %s12, 1
      %p50 = por %p48, %p49
      %p51 = scmp.ne.s32.totalorder %s43, %s46
      %p52 = scmp.eq.s32.totalorder %s12, 0
      %p53 = por %p51, %p52
      %p54 = scmp.ne.s32.totalorder %s43, %s46
      %p55 = scmp.eq.s32.totalorder %s17, 1
      %p56 = por %p54, %p55
      %p57 = scmp.ne.s32.totalorder %s46, %s47
      %p58 = scmp.eq.s32.totalorder %s17, 0
      %p59 = por %p57, %p58
      %p60 = scmp.ne.s32.totalorder %s46, %s47
      %p61 = scmp.eq.s32.totalorder %s18, 1
      %p62 = por %p60, %p61
      %p64 = scmp.ne.s32.totalorder %s47, %s63
      %p65 = scmp.eq.s32.totalorder %s18, 0
      %p66 = por %p64, %p65
      %s67 = ssub.s32 %s19, %s38
      %s68 = ssub.s32 %s20, %s34
      %s69 = sor.u32 %s67, %s68
      %p70 = scmp.eq.s32.totalorder %s69, 0
      %s72 = sadd.s32 %s71, 1
      %s73 = scalar_select %p70, %s71, %s72
      %p76 = pneg %p70
      %p77 = scmp.eq.s32.totalorder %s12, 1
      %p78 = por %p76, %p77
      %p79 = scmp.ne.s32.totalorder %s71, %s74
      %p80 = scmp.eq.s32.totalorder %s12, 0
      %p81 = por %p79, %p80
      %p82 = scmp.ne.s32.totalorder %s71, %s74
      %p83 = scmp.eq.s32.totalorder %s17, 1
      %p84 = por %p82, %p83
      %p85 = scmp.ne.s32.totalorder %s74, %s75
      %p86 = scmp.eq.s32.totalorder %s17, 0
      %p87 = por %p85, %p86
      %p88 = scmp.ne.s32.totalorder %s74, %s75
      %p89 = scmp.eq.s32.totalorder %s18, 1
      %p90 = por %p88, %p89
      %p92 = scmp.ne.s32.totalorder %s75, %s91
      %p93 = scmp.eq.s32.totalorder %s18, 0
      %p94 = por %p92, %p93
      %s95 = ssub.s32 %s19, %s38
      %s96 = ssub.s32 %s21, %s30
      %s97 = sor.u32 %s95, %s96
      %p98 = scmp.eq.s32.totalorder %s97, 0
      %s100 = sadd.s32 %s99, 1
      %s101 = scalar_select %p98, %s99, %s100
      %p104 = pneg %p98
      %p105 = scmp.eq.s32.totalorder %s12, 1
      %p106 = por %p104, %p105
      %p107 = scmp.ne.s32.totalorder %s99, %s102
      %p108 = scmp.eq.s32.totalorder %s12, 0
      %p109 = por %p107, %p108
      %p110 = scmp.ne.s32.totalorder %s99, %s102
      %p111 = scmp.eq.s32.totalorder %s17, 1
      %p112 = por %p110, %p111
      %p113 = scmp.ne.s32.totalorder %s102, %s103
      %p114 = scmp.eq.s32.totalorder %s17, 0
      %p115 = por %p113, %p114
      %p116 = scmp.ne.s32.totalorder %s102, %s103
      %p117 = scmp.eq.s32.totalorder %s18, 1
      %p118 = por %p116, %p117
      %p120 = scmp.ne.s32.totalorder %s103, %s119
      %p121 = scmp.eq.s32.totalorder %s18, 0
      %p122 = por %p120, %p121
      %s123 = ssub.s32 %s19, %s38
      %s124 = ssub.s32 %s20, %s34
      %s125 = sor.u32 %s123, %s124
      %s126 = ssub.s32 %s21, %s30
      %s127 = sor.u32 %s125, %s126
      %p128 = scmp.eq.s32.totalorder %s127, 0
      %s130 = sadd.s32 %s129, 1
      %s131 = scalar_select %p128, %s129, %s130
      %p134 = pneg %p128
      %p135 = scmp.eq.s32.totalorder %s12, 1
      %p136 = por %p134, %p135
      %p137 = scmp.ne.s32.totalorder %s129, %s132
      %p138 = scmp.eq.s32.totalorder %s12, 0
      %p139 = por %p137, %p138
      %p140 = scmp.ne.s32.totalorder %s129, %s132
      %p141 = scmp.eq.s32.totalorder %s17, 1
      %p142 = por %p140, %p141
      %p143 = scmp.ne.s32.totalorder %s132, %s133
      %p144 = scmp.eq.s32.totalorder %s17, 0
      %p145 = por %p143, %p144
      %p146 = scmp.ne.s32.totalorder %s132, %s133
      %p147 = scmp.eq.s32.totalorder %s18, 1
      %p148 = por %p146, %p147
      %p150 = scmp.ne.s32.totalorder %s133, %s149
      %p151 = scmp.eq.s32.totalorder %s18, 0
      %p152 = por %p150, %p151
      %p153 = scmp.le.s32.totalorder 1, %s12
      %p154 = scmp.lt.s32.totalorder %s12, 3
      %p155 = pnand %p153, %p154
      %p156 = pneg %p155
      // Predicated region
      $region9: #{tpu_custom_call.1} parent=5 // pred_check
        _
      $region10: #{tpu_custom_call.1} parent=5 // pred_check_branch
        %158 = sbr.rel (%p155) target = $region12
      $region11: #{tpu_custom_call.1} parent=5 // pred_region
        %s159 = ssub.s32 %s12, 1
        // Predicated region
        $region13: #{tpu_custom_call.1} parent=11 // pred_check
          %p160 = pneg %p59
        $region14: #{tpu_custom_call.1} parent=11 // pred_check_branch
          %162 = sbr.rel (%p160) target = $region16
        $region15: #{tpu_custom_call.1} parent=11 // pred_region
          %p163 = scmp.lt.s32.totalorder %s23, 0
          %s164 = scalar_select %p163, %s23, 0
          %p165 = scmp.lt.s32.totalorder %s24, 0
          %s166 = scalar_select %p165, %s24, 0
          %s167 = sadd.s32 %s166, %s164
          %s168 = smul.addr %s167, 2
          %s169 = scalar_lea.vmem %s0, %s168
        $region16: #{tpu_custom_call.1} parent=11 // pred_fallthru
          _
      $region12: #{tpu_custom_call.1} parent=5 // pred_fallthru
        _
      %p170 = scmp.lt.s32.totalorder %s12, 2
      // Predicated region
      $region17: #{tpu_custom_call.1} parent=5 // pred_check
        %p171 = pneg %p170
      $region18: #{tpu_custom_call.1} parent=5 // pred_check_branch
        %173 = sbr.rel (%p171) target = $region20
      $region19: #{tpu_custom_call.1} parent=5 // pred_region
        // Predicated region
        $region21: #{tpu_custom_call.1} parent=19 // pred_check
          %p174 = pneg %p81
        $region22: #{tpu_custom_call.1} parent=19 // pred_check_branch
          %176 = sbr.rel (%p174) target = $region24
        $region23: #{tpu_custom_call.1} parent=19 // pred_region
          %p177 = scmp.lt.s32.totalorder %s19, 1
          %s178 = scalar_select %p177, %s19, 1
          %p179 = scmp.lt.s32.totalorder %s20, 0
          %s180 = scalar_select %p179, %s20, 0
          %s181 = sadd.s32 %s180, %s178
          %s182 = smul.addr %s181, 2
          %s183 = scalar_lea.vmem %s1, %s182
        $region24: #{tpu_custom_call.1} parent=19 // pred_fallthru
          _
        // Predicated region
        $region25: #{tpu_custom_call.1} parent=19 // pred_check
          %p184 = pneg %p109
        $region26: #{tpu_custom_call.1} parent=19 // pred_check_branch
          %186 = sbr.rel (%p184) target = $region28
        $region27: #{tpu_custom_call.1} parent=19 // pred_region
          %p187 = scmp.lt.s32.totalorder %s19, 1
          %s188 = scalar_select %p187, %s19, 1
          %p189 = scmp.lt.s32.totalorder %s21, 0
          %s190 = scalar_select %p189, %s21, 0
          %s191 = smul.addr %s188, 4
          %s192 = sadd.s32 %s190, %s191
          %s193 = smul.addr %s192, 8
          %s194 = scalar_lea.vmem %s2, %s193
        $region28: #{tpu_custom_call.1} parent=19 // pred_fallthru
          _
      $region20: #{tpu_custom_call.1} parent=5 // pred_fallthru
        _
      %p195 = scmp.le.s32.totalorder 1, %s12
      %p196 = scmp.lt.s32.totalorder %s12, 3
      %p197 = pnand %p195, %p196
      %p198 = pneg %p197
      // Predicated region
      $region29: #{tpu_custom_call.1} parent=5 // pred_check
        _
      $region30: #{tpu_custom_call.1} parent=5 // pred_check_branch
        %200 = sbr.rel (%p197) target = $region32
      $region31: #{tpu_custom_call.1} parent=5 // pred_region
        %s201 = ssub.s32 %s12, 1
        %p202 = scmp.lt.s32.totalorder %s23, 0
        %s203 = scalar_select %p202, %s23, 0
        %p204 = scmp.lt.s32.totalorder %s24, 0
        %s205 = scalar_select %p204, %s24, 0
        %s206 = sadd.s32 %s205, %s203
        %s207 = smul.addr %s206, 2
        %s208 = scalar_lea.vmem %s0, %s207
        %p209 = pneg %p59
        %p210 = pneg %p56
        %p211 = scmp.lt.s32.totalorder %s22, 1
        %s212 = scalar_select %p211, %s22, 1
        %p213 = scmp.lt.s32.totalorder %s23, 0
        %s214 = scalar_select %p213, %s23, 0
        %s215 = sadd.s32 %s214, %s212
        %s216 = smul.addr %s215, 2
        %s217 = scalar_lea.vmem %s1, %s216
        %p218 = pneg %p87
        %p219 = pneg %p84
        %p220 = scmp.lt.s32.totalorder %s22, 1
        %s221 = scalar_select %p220, %s22, 1
        %p222 = scmp.lt.s32.totalorder %s24, 0
        %s223 = scalar_select %p222, %s24, 0
        %s224 = smul.addr %s221, 4
        %s225 = sadd.s32 %s223, %s224
        %s226 = smul.addr %s225, 8
        %s227 = scalar_lea.vmem %s2, %s226
        %p228 = pneg %p115
        %p229 = pneg %p112
        %p230 = pneg %p145
        %p231 = pneg %p142
        %s232 = sand.u32 %s132, 1
        %s233 = scalar_lea.sflag [#allocation3], %s232
        %s234 = sand.u32 %s132, 1
        %s235 = smul.addr %s234, 2
        %s236 = scalar_lea.vmem [#allocation2], %s235
        %p237 = scmp.lt.s32.totalorder %s23, 0
        %s238 = scalar_select %p237, %s23, 0
        %p239 = scmp.lt.s32.totalorder %s24, 0
        %s240 = scalar_select %p239, %s24, 0
        %s241 = sadd.s32 %s240, %s238
        %s242 = smul.addr %s241, 2
        %s243 = scalar_lea.vmem %s0, %s242
        %p244 = scmp.lt.s32.totalorder %s22, 1
        %s245 = scalar_select %p244, %s22, 1
        %p246 = scmp.lt.s32.totalorder %s23, 0
        %s247 = scalar_select %p246, %s23, 0
        %s248 = sadd.s32 %s247, %s245
        %s249 = smul.addr %s248, 2
        %s250 = scalar_lea.vmem %s1, %s249
        %p251 = scmp.lt.s32.totalorder %s22, 1
        %s252 = scalar_select %p251, %s22, 1
        %p253 = scmp.lt.s32.totalorder %s24, 0
        %s254 = scalar_select %p253, %s24, 0
        %s255 = smul.addr %s252, 4
        %s256 = sadd.s32 %s254, %s255
        %s257 = smul.addr %s256, 8
        %s258 = scalar_lea.vmem %s2, %s257
        %s259 = smul.u32 %s23, 2
        %s260 = smul.u32 %s24, 2
        %v261 = vlaneseq
        %v262 = vshrl.u32 %v261, 7
        %v263 = vstv %s259
        %v264 = vadd.s32 %v262, %v263
        %v265 = vlaneseq
        %v266 = vand.u32 %v265, 127
        %v267 = vstv %s260
        %v268 = vadd.s32 %v266, %v267
        %v269 = vld [vmem:[%s243] sm:$0x3]
        %vm270 = vcmp.lt.s32.totalorder %v269, 100
        %vm271 = vcmp.le.s32.totalorder %v268, %v264
        %vm272 = vmand %vm270, %vm271
        %v273 = vsel %vm272, 1, 0
        %v274 = vcvt.s32.f32 %v273
        %v275 = vld [vmem:[%s250] sm:$0x3]
        %v276 = vld [vmem:[%s258] sm:$0xff]
        %v277 = vld [vmem:[%s258 + $0x8] sm:$0xff]
        %v278 = vld [vmem:[%s258 + $0x10] sm:$0xff]
        %v279 = vld [vmem:[%s258 + $0x18] sm:$0xff]
        %vm280 = vcmask 261120
        %v282 = vsel %vm280, %v275, 0
        %284 = vmatprep.subr.mxu0 0.0
        %285 = vmatpush1.msra.mxu0 0.0
        %286 = vmatprep.subr.mxu0 0.0
        %287 = vmatpush1.msra.mxu0 0.0
        %288 = vmatprep.subr.mxu0 0.0
        %289 = vmatpush1.msra.mxu0 0.0
        %290 = vmatprep.subr.mxu0 0.0
        %291 = vmatpush1.msra.mxu0 0.0
        %292 = vmatprep.subr.mxu0 0.0
        %293 = vmatpush1.msra.mxu0 0.0
        %294 = vmatprep.subr.mxu0 0.0
        %295 = vmatpush1.msra.mxu0 0.0
        %296 = vmatprep.subr.mxu0 0.0
        %297 = vmatpush1.msra.mxu0 0.0
        %298 = vmatprep.subr.mxu0 0.0
        %299 = vmatpush1.msra.mxu0 0.0
        %300 = vmatprep.subr.mxu0 0.0
        %301 = vmatpush1.msra.mxu0 0.0
        %302 = vmatprep.subr.mxu0 0.0
        %303 = vmatpush1.msra.mxu0 0.0
        %304 = vmatprep.subr.mxu0 0.0
        %305 = vmatpush1.msra.mxu0 0.0
        %306 = vmatprep.subr.mxu0 0.0
        %307 = vmatpush1.msra.mxu0 0.0
        %308 = vmatprep.subr.mxu0 0.0
        %309 = vmatpush1.msra.mxu0 %v279
        %310 = vmatprep.subr.mxu0 0.0
        %311 = vmatpush1.msra.mxu0 %v278
        %312 = vmatprep.subr.mxu0 0.0
        %313 = vmatpush1.msra.mxu0 %v277
        %314 = vmatprep.subr.mxu0 0.0
        %315 = vmatpush1.msra.mxu0 %v276
        %316 = vmatprep.subr.mxu0 0.0
        %317 = vmatpush2.msra.mxu0 0.0
        %318 = vmatprep.subr.mxu0 0.0
        %319 = vmatpush2.msra.mxu0 0.0
        %320 = vmatprep.subr.mxu0 0.0
        %321 = vmatpush2.msra.mxu0 0.0
        %322 = vmatprep.subr.mxu0 0.0
        %323 = vmatpush2.msra.mxu0 0.0
        %324 = vmatprep.subr.mxu0 0.0
        %325 = vmatpush2.msra.mxu0 0.0
        %326 = vmatprep.subr.mxu0 0.0
        %327 = vmatpush2.msra.mxu0 0.0
        %328 = vmatprep.subr.mxu0 0.0
        %329 = vmatpush2.msra.mxu0 0.0
        %330 = vmatprep.subr.mxu0 0.0
        %331 = vmatpush2.msra.mxu0 0.0
        %332 = vmatprep.subr.mxu0 0.0
        %333 = vmatpush2.msra.mxu0 0.0
        %334 = vmatprep.subr.mxu0 0.0
        %335 = vmatpush2.msra.mxu0 0.0
        %336 = vmatprep.subr.mxu0 0.0
        %337 = vmatpush2.msra.mxu0 0.0
        %338 = vmatprep.subr.mxu0 0.0
        %339 = vmatpush2.msra.mxu0 0.0
        %340 = vmatprep.subr.mxu0 0.0
        %341 = vmatpush2.msra.mxu0 0.0
        %342 = vmatprep.subr.mxu0 0.0
        %343 = vmatpush2.msra.mxu0 0.0
        %344 = vmatprep.subr.mxu0 0.0
        %345 = vmatpush2.msra.mxu0 0.0
        %346 = vmatprep.subr.mxu0 0.0
        %347 = vmatpush2.msra.mxu0 0.0
        %348 = vmatprep.mubr.f32.mxu0 0.0
        %349 = vmatmul.mubr.f32.gmra.mxu0 %v282
        %v350 = vpop.f32.mrf.mxu0
        %v351 = vadd.f32 %v274, %v350
        %v352 = vpop.f32.mrf.mxu0
        %353 = vdwg.mxu0
        %vm354 = vcmask 9216
        %355 = vst.msk [vmem:[%s236] sm:$0x3] %vm354, %v351
        %s356 = sand.u32 %s132, 1
        %s357 = scalar_lea.sflag [#allocation3], %s356
        %s358 = sand.u32 %s132, 1
        %s359 = smul.addr %s358, 2
        %s360 = scalar_lea.vmem [#allocation2], %s359
        // Predicated region
        $region33: #{tpu_custom_call.1} parent=31 // pred_check
          %p361 = pneg %p142
        $region34: #{tpu_custom_call.1} parent=31 // pred_check_branch
          %363 = sbr.rel (%p361) target = $region36
        $region35: #{tpu_custom_call.1} parent=31 // pred_region
          %s365 = ssub.s32 32, 32
          %366 = vsyncadd %s357, %s365
          %s367 = sadd.s32 %s24, %s23
          %s368 = sadd.s32 %s367, %s22
          %s369 = smul.addr %s368, 32
          %s370 = scalar_lea.hbm %s3, %s369
          %s372 = sshll.u32 %s360, 4
          %s373 = int_to_ptr.vmem [resolvable:$true] %s372
          %375 = dma.vmem_to_hbm [thread:$0]  %s373, 32, %s370, %s357
        $region36: #{tpu_custom_call.1} parent=31 // pred_fallthru
          _
      $region32: #{tpu_custom_call.1} parent=5 // pred_fallthru
        _
      %p376 = scmp.le.s32.totalorder 2, %s12
      // Predicated region
      $region37: #{tpu_custom_call.1} parent=5 // pred_check
        %p377 = pneg %p376
      $region38: #{tpu_custom_call.1} parent=5 // pred_check_branch
        %379 = sbr.rel (%p377) target = $region40
      $region39: #{tpu_custom_call.1} parent=5 // pred_region
        %s380 = ssub.s32 %s12, 2
        // Predicated region
        $region41: #{tpu_custom_call.1} parent=39 // pred_check
          %p381 = pneg %p148
        $region42: #{tpu_custom_call.1} parent=39 // pred_check_branch
          %383 = sbr.rel (%p381) target = $region44
        $region43: #{tpu_custom_call.1} parent=39 // pred_region
          %s384 = sand.u32 %s133, 1
          %s385 = scalar_lea.sflag [#allocation3], %s384
          %s386 = sand.u32 %s133, 1
          %s387 = smul.addr %s386, 2
          %s388 = scalar_lea.vmem [#allocation2], %s387
          %389 = dma.done %s385, 32
        $region44: #{tpu_custom_call.1} parent=39 // pred_fallthru
          _
      $region40: #{tpu_custom_call.1} parent=5 // pred_fallthru
        _
    $region6: #{tpu_custom_call.1} parent=1 // loop_footer
      %s16 = sadd.s32 1, %s12
    $region7: #{tpu_custom_call.1} parent=1 // loop_footer_branch
      %11 = sbr.rel target = $region3
    $region8: #{tpu_custom_call.1} parent=1 // loop_exit
      _
    %390 = vsyncpa [#allocation3], 1
    %s391 = scalar_lea.sflag [#allocation3], 1
    %392 = vsyncpa %s391, 1

</llo_original>
